<compile_context>
chip_gen: v7x
topology: tpu7x:2x2x1
jax: 0.10.0
libtpu: 0.0.40
codegen_flags: <defaults>
</compile_context>

<pallas_src>
import functools

import jax
import jax.numpy as jnp
from jax.experimental import pallas as pl
from jax.experimental.pallas import tpu as pltpu


def _mlp_kernel(te_ref, x_ref, wg_ref, wu_ref, wd_ref,
                sg_ref, su_ref, sd_ref, o_ref, acc_ref):
    # te_ref: SMEM (num_tiles,) int32 per-tile expert id (used only by index_maps)
    # x_ref:  VMEM (Tm, H)  bf16 token tile (all rows belong to one expert)
    # wg_ref: VMEM (H, TN)  int8 quantized gate weight block
    # wu_ref: VMEM (H, TN)  int8 quantized up weight block
    # wd_ref: VMEM (TN, H)  int8 quantized down weight block
    # sg/su:  VMEM (1, TN)  f32 per-output-channel scales (gate / up)
    # sd_ref: VMEM (1, H)   f32 per-output-channel scales (down)
    # o_ref:  VMEM (Tm, H)  f32
    # acc_ref:VMEM (Tm, H)  f32 scratch accumulator (persists across the I axis)
    del te_ref
    n = pl.program_id(1)

    @pl.when(n == 0)
    def _init():
        acc_ref[...] = jnp.zeros_like(acc_ref)

    x = x_ref[...]                                                  # (Tm, H) bf16

    # int8 -> bf16 (exact for 4-bit values); scales deferred to after the dot.
    wg = wg_ref[...].astype(jnp.bfloat16)                           # (H, TN)
    wu = wu_ref[...].astype(jnp.bfloat16)                           # (H, TN)
    gate = jnp.dot(x, wg, preferred_element_type=jnp.float32) * sg_ref[...]
    up = jnp.dot(x, wu, preferred_element_type=jnp.float32) * su_ref[...]
    h = (gate * jax.nn.sigmoid(gate) * up).astype(jnp.bfloat16)     # SiLU(g)*u, (Tm, TN)

    wd = wd_ref[...].astype(jnp.bfloat16)                           # (TN, H)
    acc_ref[...] += jnp.dot(h, wd, preferred_element_type=jnp.float32)

    @pl.when(n == pl.num_programs(1) - 1)
    def _finalize():
        # down-proj per-output-channel scale applied once at the end.
        o_ref[...] = (acc_ref[...] * sd_ref[...]).astype(o_ref.dtype)


def _layout_tokens_by_expert(indices, num_experts, tm, num_tiles):
    """Device-side grouping: sort tokens by expert, pad each expert group to a
    multiple of tm inside a STATIC (num_tiles * tm)-row buffer.

    Returns (gather_rows, scatter_rows, tile_expert):
      gather_rows[r]  = source token for padded row r (pad rows reuse token 0),
      scatter_rows[t] = padded row holding token t's result,
      tile_expert[i]  = expert id of tile i (homogeneous per tile).
    """
    T = indices.shape[0]
    rows_total = num_tiles * tm

    sort_idx = jnp.argsort(indices).astype(jnp.int32)               # tokens sorted by expert
    sorted_e = indices[sort_idx]

    counts = jnp.bincount(indices, length=num_experts).astype(jnp.int32)
    padded = (((counts + tm - 1) // tm) * tm).astype(jnp.int32)
    zero = jnp.zeros((1,), jnp.int32)
    off = jnp.concatenate([zero, jnp.cumsum(padded)[:-1].astype(jnp.int32)])
    cum_counts = jnp.concatenate([zero, jnp.cumsum(counts)[:-1].astype(jnp.int32)])

    p = jnp.arange(T, dtype=jnp.int32)
    rank_in_expert = p - cum_counts[sorted_e]
    rows_for_sorted = (off[sorted_e] + rank_in_expert).astype(jnp.int32)

    scatter_rows = jnp.zeros((T,), jnp.int32).at[sort_idx].set(rows_for_sorted)
    gather_rows = jnp.zeros((rows_total,), jnp.int32).at[rows_for_sorted].set(sort_idx)

    row_start = jnp.arange(num_tiles, dtype=jnp.int32) * tm
    tile_expert = jnp.sum(row_start[:, None] >= off[None, :], axis=1) - 1
    tile_expert = jnp.clip(tile_expert, 0, num_experts - 1).astype(jnp.int32)
    return gather_rows, scatter_rows, tile_expert


def llama_compressed_mlp(x, indices, qw_gate, qw_up, qw_down,
                         s_gate, s_up, s_down, *, tm=256, tn=None,
                         vmem_limit_bytes=48 * 1024 * 1024):
    """Expert-indexed SwiGLU MLP with quantized weights.

    x:        (T, H) f32
    indices:  (T,)   int32 expert id per token
    qw_gate:  (E, H, I) int8   s_gate: (E, 1, I) f32
    qw_up:    (E, H, I) int8   s_up:   (E, 1, I) f32
    qw_down:  (E, I, H) int8   s_down: (E, 1, H) f32
    tm: token-tile rows (multiple of 16).  tn: intermediate block (mult of 128).
    """
    T, H = x.shape
    E, _, I = qw_gate.shape
    if tn is None:
        tn = min(I, 1024)
    assert tm % 16 == 0, "tm must be a multiple of 16 (bf16 sublane packing)"
    assert I % tn == 0 and (tn % 128 == 0 or tn == I)
    num_n = I // tn

    # Static tile count -> static shapes -> no recompile when routing changes.
    num_tiles = -(-T // tm) + E
    gather_rows, scatter_rows, tile_expert = _layout_tokens_by_expert(
        indices, E, tm, num_tiles)
    x_grouped = x[gather_rows].astype(jnp.bfloat16)                 # (num_tiles*tm, H)

    out_grouped = pl.pallas_call(
        _mlp_kernel,
        out_shape=jax.ShapeDtypeStruct((num_tiles * tm, H), jnp.float32),
        grid_spec=pltpu.PrefetchScalarGridSpec(
            num_scalar_prefetch=1,
            grid=(num_tiles, num_n),
            in_specs=[
                # token tile: independent of the inner axis -> DMA'd once per tile
                pl.BlockSpec((tm, H), lambda i, n, te: (i, 0)),
                # weight blocks streamed along the intermediate dim
                pl.BlockSpec((None, H, tn), lambda i, n, te: (te[i], 0, n)),
                pl.BlockSpec((None, H, tn), lambda i, n, te: (te[i], 0, n)),
                pl.BlockSpec((None, tn, H), lambda i, n, te: (te[i], n, 0)),
                # per-output-channel scales
                pl.BlockSpec((None, 1, tn), lambda i, n, te: (te[i], 0, n)),
                pl.BlockSpec((None, 1, tn), lambda i, n, te: (te[i], 0, n)),
                pl.BlockSpec((None, 1, H), lambda i, n, te: (te[i], 0, 0)),
            ],
            out_specs=pl.BlockSpec((tm, H), lambda i, n, te: (i, 0)),
            scratch_shapes=[pltpu.VMEM((tm, H), jnp.float32)],
        ),
        compiler_params=pltpu.CompilerParams(
            dimension_semantics=("parallel", "arbitrary"),
            vmem_limit_bytes=vmem_limit_bytes),
    )(tile_expert, x_grouped, qw_gate, qw_up, qw_down, s_gate, s_up, s_down)

    return out_grouped[scatter_rows]                                # unsort -> (T, H)


def make_expert_qweights(key, num_experts, n_in, n_out):
    """Synthetic 4-bit, 2:4-sparse expert weights kept quantized.

    Returns (q_int8 (E,n_in,n_out), scales (E,1,n_out) f32, dense f32 reference).
    """
    kq, ks, km = jax.random.split(key, 3)
    q = jax.random.randint(kq, (num_experts, n_in, n_out), 0, 16, dtype=jnp.int32)
    # groupsize = n_in (module default groupsize=-1) -> one scale group along K.
    scales = jax.random.uniform(ks, (num_experts, 1, n_out),
                                dtype=jnp.float32, minval=0.01, maxval=0.02)
    # 2:4 structured sparsity along the input dim (keep 2 of every 4).
    scores = jax.random.uniform(km, (num_experts, n_in // 4, 4, n_out))
    thresh = jnp.sort(scores, axis=2)[:, :, 2:3, :]
    keep = (scores >= thresh).reshape(num_experts, n_in, n_out)
    q_int8 = ((q - 8) * keep.astype(jnp.int32)).astype(jnp.int8)    # values in [-8, 7]
    dense = q_int8.astype(jnp.float32) * scales                     # fp32 reference copy
    return q_int8, scales, dense


def _reference(x, indices, w_gate_up, w_down):
    gu = jnp.einsum('th,thd->td', x, w_gate_up[indices])
    d = gu.shape[-1] // 2
    gate, up = gu[:, :d], gu[:, d:]
    h = jax.nn.silu(gate) * up
    return jnp.einsum('ti,tih->th', h, w_down[indices])


if __name__ == "__main__":
    hidden_size = 128
    intermediate_size = 256
    num_experts = 4
    num_tokens = 16
    tm = 16    # small for the test; at real sizes use 128 (v5e) / 256 (v6e/v7x)
    tn = 128   # exercises the streamed-I accumulator path (2 inner steps)

    key = jax.random.PRNGKey(0)
    kx, ki, kgu, kd = jax.random.split(key, 4)

    x = jax.random.normal(kx, (num_tokens, hidden_size), dtype=jnp.float32)
    indices = jax.random.randint(ki, (num_tokens,), 0, num_experts, dtype=jnp.int32)

    # gate_up_proj: in=hidden_size, out=2*intermediate_size (then split gate / up)
    q_gu, s_gu, dense_gu = make_expert_qweights(kgu, num_experts, hidden_size,
                                                2 * intermediate_size)
    # down_proj: in=intermediate_size, out=hidden_size
    q_d, s_d, dense_d = make_expert_qweights(kd, num_experts, intermediate_size,
                                             hidden_size)

    q_gate = q_gu[:, :, :intermediate_size]
    q_up = q_gu[:, :, intermediate_size:]
    s_gate = s_gu[:, :, :intermediate_size]
    s_up = s_gu[:, :, intermediate_size:]

    mlp = jax.jit(functools.partial(llama_compressed_mlp, tm=tm, tn=tn))
    out = mlp(x, indices, q_gate, q_up, q_d, s_gate, s_up, s_d)
    out = jax.block_until_ready(out)

    ref = _reference(x, indices, dense_gu, dense_d)
    assert out.shape == (num_tokens, hidden_size)
    # bf16 MXU feed + deferred scales -> small fp differences vs the f32 reference.
    assert jnp.allclose(out, ref, atol=3e-2, rtol=3e-2), "mismatch vs reference"

    print("KERNEL_OK")
</pallas_src>

<mosaic_0001>
module attributes {stable_mosaic.version = 11 : i64} {
  func.func private @main(%arg0: i32) attributes {dimension_semantics = [#tpu.dimension_semantics<core_parallel>], iteration_bounds = array<i64: 2>, tpu.core_type = #tpu.core_type<sc_scalar_subcore>, window_params = []} {
    return
  }
}

module attributes {stable_mosaic.version = 11 : i64} {
  func.func private @main(%arg0: i32) attributes {dimension_semantics = [#tpu.dimension_semantics<core_parallel>], iteration_bounds = array<i64: 2>, tpu.core_type = #tpu.core_type<sc_scalar_subcore>, window_params = []} {
    return
  }
}

module attributes {stable_mosaic.version = 11 : i64} {
  func.func @_mlp_kernel(%arg0: i32, %arg1: i32, %arg2: memref<5xi32, #tpu.memory_space<smem>>, %arg3: memref<16x128xbf16, #tpu.memory_space<vmem>>, %arg4: memref<1x128x128xi8, #tpu.memory_space<vmem>>, %arg5: memref<1x128x128xi8, #tpu.memory_space<vmem>>, %arg6: memref<1x128x128xi8, #tpu.memory_space<vmem>>, %arg7: memref<1x1x128xf32, #tpu.memory_space<vmem>>, %arg8: memref<1x1x128xf32, #tpu.memory_space<vmem>>, %arg9: memref<1x1x128xf32, #tpu.memory_space<vmem>>, %arg10: memref<16x128xf32, #tpu.memory_space<vmem>>, %arg11: memref<16x128xf32, #tpu.memory_space<vmem>>) attributes {dimension_semantics = [#tpu.dimension_semantics<parallel>, #tpu.dimension_semantics<arbitrary>], iteration_bounds = array<i64: 5, 2>, scalar_prefetch = 1 : i64, scratch_operands = 1 : i64, tpu.core_type = #tpu.core_type<tc>, window_params = [{transform_indices = @transform_0, window_bounds = array<i64: 16, 128>}, {transform_indices = @transform_1, window_bounds = array<i64: 1, 128, 128>}, {transform_indices = @transform_2, window_bounds = array<i64: 1, 128, 128>}, {transform_indices = @transform_3, window_bounds = array<i64: 1, 128, 128>}, {transform_indices = @transform_4, window_bounds = array<i64: 1, 1, 128>}, {transform_indices = @transform_5, window_bounds = array<i64: 1, 1, 128>}, {transform_indices = @transform_6, window_bounds = array<i64: 1, 1, 128>}, {transform_indices = @transform_7, window_bounds = array<i64: 16, 128>}]} {
    %c0_i32 = arith.constant 0 : i32
    %0 = arith.cmpi eq, %arg1, %c0_i32 : i32
    %1 = arith.extui %0 : i1 to i32
    %c0_i32_0 = arith.constant 0 : i32
    %2 = arith.cmpi ne, %1, %c0_i32_0 : i32
    scf.if %2 {
      %cst_25 = arith.constant 0.000000e+00 : f32
      %38 = vector.broadcast %cst_25 : f32 to vector<16x128xf32>
      %c0_26 = arith.constant 0 : index
      %c0_27 = arith.constant 0 : index
      %39 = vector.load %arg11[%c0_26, %c0_27] : memref<16x128xf32, #tpu.memory_space<vmem>>, vector<16x128xf32>
      tpu.vector_store %arg11[%c0_26, %c0_27], %38 {strides = array<i32>} : memref<16x128xf32, #tpu.memory_space<vmem>>, vector<16x128xf32>,
    } else {
    }
    %c0 = arith.constant 0 : index
    %c0_1 = arith.constant 0 : index
    %3 = vector.load %arg3[%c0, %c0_1] : memref<16x128xbf16, #tpu.memory_space<vmem>>, vector<16x128xbf16>
    %c0_2 = arith.constant 0 : index
    %c0_3 = arith.constant 0 : index
    %c0_4 = arith.constant 0 : index
    %4 = vector.load %arg4[%c0_2, %c0_3, %c0_4] : memref<1x128x128xi8, #tpu.memory_space<vmem>>, vector<1x128x128xi8>
    %5 = vector.shape_cast %4 : vector<1x128x128xi8> to vector<128x128xi8>
    %6 = arith.sitofp %5 : vector<128x128xi8> to vector<128x128xbf16>
    %c0_5 = arith.constant 0 : index
    %c0_6 = arith.constant 0 : index
    %c0_7 = arith.constant 0 : index
    %7 = vector.load %arg5[%c0_5, %c0_6, %c0_7] : memref<1x128x128xi8, #tpu.memory_space<vmem>>, vector<1x128x128xi8>
    %8 = vector.shape_cast %7 : vector<1x128x128xi8> to vector<128x128xi8>
    %9 = arith.sitofp %8 : vector<128x128xi8> to vector<128x128xbf16>
    %cst = arith.constant dense<0.000000e+00> : vector<16x128xf32>
    %10 = tpu.matmul %3, %6, %cst {dimension_numbers = #tpu.dot_dimension_numbers<[1], [0], [0], [1], [0, 0, 1, 1], [], []>} : vector<16x128xbf16>, vector<128x128xbf16>, vector<16x128xf32> -> vector<16x128xf32>
    %c0_8 = arith.constant 0 : index
    %c0_9 = arith.constant 0 : index
    %c0_10 = arith.constant 0 : index
    %11 = vector.load %arg7[%c0_8, %c0_9, %c0_10] : memref<1x1x128xf32, #tpu.memory_space<vmem>>, vector<1x1x128xf32>
    %12 = vector.shape_cast %11 : vector<1x1x128xf32> to vector<1x128xf32>
    %13 = vector.broadcast %12 : vector<1x128xf32> to vector<16x128xf32>
    %14 = arith.mulf %10, %13 : vector<16x128xf32>
    %cst_11 = arith.constant dense<0.000000e+00> : vector<16x128xf32>
    %15 = tpu.matmul %3, %9, %cst_11 {dimension_numbers = #tpu.dot_dimension_numbers<[1], [0], [0], [1], [0, 0, 1, 1], [], []>} : vector<16x128xbf16>, vector<128x128xbf16>, vector<16x128xf32> -> vector<16x128xf32>
    %c0_12 = arith.constant 0 : index
    %c0_13 = arith.constant 0 : index
    %c0_14 = arith.constant 0 : index
    %16 = vector.load %arg8[%c0_12, %c0_13, %c0_14] : memref<1x1x128xf32, #tpu.memory_space<vmem>>, vector<1x1x128xf32>
    %17 = vector.shape_cast %16 : vector<1x1x128xf32> to vector<1x128xf32>
    %18 = vector.broadcast %17 : vector<1x128xf32> to vector<16x128xf32>
    %19 = arith.mulf %15, %18 : vector<16x128xf32>
    %20 = arith.negf %14 : vector<16x128xf32>
    %21 = math.exp %20 : vector<16x128xf32>
    %cst_15 = arith.constant 1.000000e+00 : f32
    %22 = vector.broadcast %cst_15 : f32 to vector<16x128xf32>
    %23 = arith.addf %22, %21 : vector<16x128xf32>
    %24 = arith.divf %22, %23 : vector<16x128xf32>
    %25 = arith.mulf %14, %24 : vector<16x128xf32>
    %26 = arith.mulf %25, %19 : vector<16x128xf32>
    %27 = arith.truncf %26 : vector<16x128xf32> to vector<16x128xbf16>
    %c0_16 = arith.constant 0 : index
    %c0_17 = arith.constant 0 : index
    %c0_18 = arith.constant 0 : index
    %28 = vector.load %arg6[%c0_16, %c0_17, %c0_18] : memref<1x128x128xi8, #tpu.memory_space<vmem>>, vector<1x128x128xi8>
    %29 = vector.shape_cast %28 : vector<1x128x128xi8> to vector<128x128xi8>
    %30 = arith.sitofp %29 : vector<128x128xi8> to vector<128x128xbf16>
    %c0_19 = arith.constant 0 : index
    %c0_20 = arith.constant 0 : index
    %31 = vector.load %arg11[%c0_19, %c0_20] : memref<16x128xf32, #tpu.memory_space<vmem>>, vector<16x128xf32>
    %cst_21 = arith.constant dense<0.000000e+00> : vector<16x128xf32>
    %32 = tpu.matmul %27, %30, %cst_21 {dimension_numbers = #tpu.dot_dimension_numbers<[1], [0], [0], [1], [0, 0, 1, 1], [], []>} : vector<16x128xbf16>, vector<128x128xbf16>, vector<16x128xf32> -> vector<16x128xf32>
    %33 = arith.addf %31, %32 : vector<16x128xf32>
    %c0_22 = arith.constant 0 : index
    %c0_23 = arith.constant 0 : index
    %34 = vector.load %arg11[%c0_22, %c0_23] : memref<16x128xf32, #tpu.memory_space<vmem>>, vector<16x128xf32>
    tpu.vector_store %arg11[%c0_22, %c0_23], %33 {strides = array<i32>} : memref<16x128xf32, #tpu.memory_space<vmem>>, vector<16x128xf32>,
    %c1_i32 = arith.constant 1 : i32
    %35 = arith.cmpi eq, %arg1, %c1_i32 : i32
    %36 = arith.extui %35 : i1 to i32
    %c0_i32_24 = arith.constant 0 : i32
    %37 = arith.cmpi ne, %36, %c0_i32_24 : i32
    scf.if %37 {
      %c0_25 = arith.constant 0 : index
      %c0_26 = arith.constant 0 : index
      %38 = vector.load %arg11[%c0_25, %c0_26] : memref<16x128xf32, #tpu.memory_space<vmem>>, vector<16x128xf32>
      %c0_27 = arith.constant 0 : index
      %c0_28 = arith.constant 0 : index
      %c0_29 = arith.constant 0 : index
      %39 = vector.load %arg9[%c0_27, %c0_28, %c0_29] : memref<1x1x128xf32, #tpu.memory_space<vmem>>, vector<1x1x128xf32>
      %40 = vector.shape_cast %39 : vector<1x1x128xf32> to vector<1x128xf32>
      %41 = vector.broadcast %40 : vector<1x128xf32> to vector<16x128xf32>
      %42 = arith.mulf %38, %41 : vector<16x128xf32>
      %c0_30 = arith.constant 0 : index
      %c0_31 = arith.constant 0 : index
      %43 = vector.load %arg10[%c0_30, %c0_31] : memref<16x128xf32, #tpu.memory_space<vmem>>, vector<16x128xf32>
      tpu.vector_store %arg10[%c0_30, %c0_31], %42 {strides = array<i32>} : memref<16x128xf32, #tpu.memory_space<vmem>>, vector<16x128xf32>,
    } else {
    }
    return
  }
  func.func @transform_0(%arg0: i32, %arg1: i32, %arg2: memref<5xi32, #tpu.memory_space<smem>>) -> (i32, i32) {
    %c0_i32 = arith.constant 0 : i32
    %c0_i32_0 = arith.constant 0 : i32
    return %arg0, %c0_i32 : i32, i32
  }
  func.func @transform_1(%arg0: i32, %arg1: i32, %arg2: memref<5xi32, #tpu.memory_space<smem>>) -> (i32, i32, i32) {
    %0 = arith.index_cast %arg0 : i32 to index
    %1 = memref.load %arg2[%0] : memref<5xi32, #tpu.memory_space<smem>>
    %c0_i32 = arith.constant 0 : i32
    %c0_i32_0 = arith.constant 0 : i32
    return %1, %c0_i32, %arg1 : i32, i32, i32
  }
  func.func @transform_2(%arg0: i32, %arg1: i32, %arg2: memref<5xi32, #tpu.memory_space<smem>>) -> (i32, i32, i32) {
    %0 = arith.index_cast %arg0 : i32 to index
    %1 = memref.load %arg2[%0] : memref<5xi32, #tpu.memory_space<smem>>
    %c0_i32 = arith.constant 0 : i32
    %c0_i32_0 = arith.constant 0 : i32
    return %1, %c0_i32, %arg1 : i32, i32, i32
  }
  func.func @transform_3(%arg0: i32, %arg1: i32, %arg2: memref<5xi32, #tpu.memory_space<smem>>) -> (i32, i32, i32) {
    %0 = arith.index_cast %arg0 : i32 to index
    %1 = memref.load %arg2[%0] : memref<5xi32, #tpu.memory_space<smem>>
    %c0_i32 = arith.constant 0 : i32
    %c0_i32_0 = arith.constant 0 : i32
    return %1, %arg1, %c0_i32 : i32, i32, i32
  }
  func.func @transform_4(%arg0: i32, %arg1: i32, %arg2: memref<5xi32, #tpu.memory_space<smem>>) -> (i32, i32, i32) {
    %0 = arith.index_cast %arg0 : i32 to index
    %1 = memref.load %arg2[%0] : memref<5xi32, #tpu.memory_space<smem>>
    %c0_i32 = arith.constant 0 : i32
    %c0_i32_0 = arith.constant 0 : i32
    return %1, %c0_i32, %arg1 : i32, i32, i32
  }
  func.func @transform_5(%arg0: i32, %arg1: i32, %arg2: memref<5xi32, #tpu.memory_space<smem>>) -> (i32, i32, i32) {
    %0 = arith.index_cast %arg0 : i32 to index
    %1 = memref.load %arg2[%0] : memref<5xi32, #tpu.memory_space<smem>>
    %c0_i32 = arith.constant 0 : i32
    %c0_i32_0 = arith.constant 0 : i32
    return %1, %c0_i32, %arg1 : i32, i32, i32
  }
  func.func @transform_6(%arg0: i32, %arg1: i32, %arg2: memref<5xi32, #tpu.memory_space<smem>>) -> (i32, i32, i32) {
    %0 = arith.index_cast %arg0 : i32 to index
    %1 = memref.load %arg2[%0] : memref<5xi32, #tpu.memory_space<smem>>
    %c0_i32 = arith.constant 0 : i32
    %c0_i32_0 = arith.constant 0 : i32
    %c0_i32_1 = arith.constant 0 : i32
    return %1, %c0_i32, %c0_i32_0 : i32, i32, i32
  }
  func.func @transform_7(%arg0: i32, %arg1: i32, %arg2: memref<5xi32, #tpu.memory_space<smem>>) -> (i32, i32) {
    %c0_i32 = arith.constant 0 : i32
    %c0_i32_0 = arith.constant 0 : i32
    return %arg0, %c0_i32 : i32, i32
  }
}

</mosaic_0001>

<llo_original>
// kernel: llama_compressed_mlp.1
$region0: #{llama_compressed_mlp.1}
  #allocation0 [shape = 'u32[]', space=smem, size = 0x4, offset = 0x4, fixed_abs, tag = 'smem constant byte address 0x4 - core index']
  #allocation1 [shape = 'u32[144,128]{1,0:T(1,128)}', space=vmem, size = 0x12000, scoped, tag = 'internal scratch']
  #allocation2 [shape = 'f32[16,128]{1,0:T(8,128)}', space=vmem, size = 0x2000, scoped, tag = 'scratch operand']
  #allocation3 [shape = 's32[1]{0}', space=sflag, size = 0x4, scoped, tag = 'scoped memory for llama_compressed_mlp.1']
  #allocation4 [shape = 'u8[512]{0}', space=smem, size = 0x200, scoped, tag = 'prefetched SMEM operand 0']
  %s0 = inlined_call_operand.vmem [shape: s32[5], index: 0, kind: input, shape index: {}]
  %s1 = inlined_call_operand.vmem [shape: bf16[80,128], index: 1, kind: input, shape index: {}]
  %s2 = inlined_call_operand.vmem [shape: s8[4,128,256], index: 2, kind: input, shape index: {}]
  %s3 = inlined_call_operand.vmem [shape: s8[4,128,256], index: 3, kind: input, shape index: {}]
  %s4 = inlined_call_operand.vmem [shape: s8[4,256,128], index: 4, kind: input, shape index: {}]
  %s5 = inlined_call_operand.vmem [shape: f32[4,1,256], index: 5, kind: input, shape index: {}]
  %s6 = inlined_call_operand.vmem [shape: f32[4,1,256], index: 6, kind: input, shape index: {}]
  %s7 = inlined_call_operand.vmem [shape: f32[4,1,128], index: 7, kind: input, shape index: {}]
  %s8 = inlined_call_operand.vmem [shape: f32[80,128], index: 8, kind: output, shape index: {}]
  %s9 = sld [smem:[#allocation0]]
  $region145: #{llama_compressed_mlp.1} parent=0
    _
  %s11 = ssub.s32 1, %s9
  %s12 = scalar_select 0, %s11, %s9
  %s13 = sshll.u32 %s0, 4
  %s14 = int_to_ptr.vmem [resolvable:$true] %s13
  %16 = dma.vmem_to_smem %s14, 16, [#allocation4], [#allocation3]
  %17 = dma.done [#allocation3], 16
  %18 = sfence
  $region1: #{llama_compressed_mlp.1} parent=0
    #allocation5 [shape = 'u8[32768]{0}', space=vmem, size = 0x8000, scoped, tag = 'input window, operand 2']
    #allocation6 [shape = 'u8[32768]{0}', space=vmem, size = 0x8000, scoped, tag = 'input window, operand 3']
    loop: start=0, step=1, limit=12
    $region2: #{llama_compressed_mlp.1} parent=1 // loop_pre_header
      _
    $region3: #{llama_compressed_mlp.1} parent=1 // loop_header
      %s20 = sphi 0, %s24
      %p21 = scmp.ge.s32.totalorder %s20, 12
      %s27 = sphi 0, %s39
      %s28 = sphi 0, %s35
      %s29 = sphi 0, %s27
      %s30 = sphi 0, %s28
      %s31 = sphi 0, %s29
      %s32 = sphi 0, %s30
      %s42 = sphi 0, %s44
      %s45 = sphi 0, %s42
      %s46 = sphi 0, %s45
      %s62 = sphi 0, %s46
      %s72 = sphi 0, %s74
      %s75 = sphi 0, %s72
      %s76 = sphi 0, %s75
      %s92 = sphi 0, %s76
      %s102 = sphi 0, %s104
      %s105 = sphi 0, %s102
      %s106 = sphi 0, %s105
      %s122 = sphi 0, %s106
      %s132 = sphi 0, %s134
      %s135 = sphi 0, %s132
      %s136 = sphi 0, %s135
      %s152 = sphi 0, %s136
      %s162 = sphi 0, %s164
      %s165 = sphi 0, %s162
      %s166 = sphi 0, %s165
      %s182 = sphi 0, %s166
      %s192 = sphi 0, %s194
      %s195 = sphi 0, %s192
      %s196 = sphi 0, %s195
      %s212 = sphi 0, %s196
      %s220 = sphi 0, %s222
      %s223 = sphi 0, %s220
      %s224 = sphi 0, %s223
      %s240 = sphi 0, %s224
      %s246 = sphi 0, %s248
      %s249 = sphi 0, %s246
      %s250 = sphi 0, %s249
      %s266 = sphi 0, %s250
    $region4: #{llama_compressed_mlp.1} parent=1 // loop_header_branch
      %23 = sbr.rel (%p21) target = $region8
    $region5: #{llama_compressed_mlp.1} parent=1 // loop_body
      %s25 = ssub.s32 %s20, 1
      %s26 = ssub.s32 %s20, 2
      %s33 = sadd.s32 1, %s28
      %p34 = scmp.ge.s32.totalorder %s33, 2
      %s35 = scalar_select %p34, 0, %s33
      %s36 = sadd.s32 1, %s27
      %s37 = scalar_select %p34, %s36, %s27
      %p38 = scmp.ge.s32.totalorder %s37, 5
      %s39 = scalar_select %p38, 0, %s37
      %s40 = ssub.s32 %s27, %s39
      %p41 = scmp.eq.s32.totalorder %s40, 0
      %s43 = sadd.s32 %s42, 1
      %s44 = scalar_select %p41, %s42, %s43
      %p47 = pneg %p41
      %p48 = scmp.eq.s32.totalorder %s20, 9
      %p49 = por %p47, %p48
      %p50 = scmp.ne.s32.totalorder %s42, %s45
      %p51 = scmp.eq.s32.totalorder %s20, 0
      %p52 = por %p50, %p51
      %p53 = scmp.ne.s32.totalorder %s42, %s45
      %p54 = scmp.eq.s32.totalorder %s25, 9
      %p55 = por %p53, %p54
      %p56 = scmp.ne.s32.totalorder %s45, %s46
      %p57 = scmp.eq.s32.totalorder %s25, 0
      %p58 = por %p56, %p57
      %p59 = scmp.ne.s32.totalorder %s45, %s46
      %p60 = scmp.eq.s32.totalorder %s26, 9
      %p61 = por %p59, %p60
      %p63 = scmp.ne.s32.totalorder %s46, %s62
      %p64 = scmp.eq.s32.totalorder %s26, 0
      %p65 = por %p63, %p64
      %s66 = sld [smem:[#allocation4 + %s27]]
      %s67 = sld [smem:[#allocation4 + %s39]]
      %s68 = ssub.s32 %s66, %s67
      %s69 = ssub.s32 %s28, %s35
      %s70 = sor.u32 %s68, %s69
      %p71 = scmp.eq.s32.totalorder %s70, 0
      %s73 = sadd.s32 %s72, 1
      %s74 = scalar_select %p71, %s72, %s73
      %p77 = pneg %p71
      %p78 = scmp.eq.s32.totalorder %s20, 9
      %p79 = por %p77, %p78
      %p80 = scmp.ne.s32.totalorder %s72, %s75
      %p81 = scmp.eq.s32.totalorder %s20, 0
      %p82 = por %p80, %p81
      %p83 = scmp.ne.s32.totalorder %s72, %s75
      %p84 = scmp.eq.s32.totalorder %s25, 9
      %p85 = por %p83, %p84
      %p86 = scmp.ne.s32.totalorder %s75, %s76
      %p87 = scmp.eq.s32.totalorder %s25, 0
      %p88 = por %p86, %p87
      %p89 = scmp.ne.s32.totalorder %s75, %s76
      %p90 = scmp.eq.s32.totalorder %s26, 9
      %p91 = por %p89, %p90
      %p93 = scmp.ne.s32.totalorder %s76, %s92
      %p94 = scmp.eq.s32.totalorder %s26, 0
      %p95 = por %p93, %p94
      %s96 = sld [smem:[#allocation4 + %s27]]
      %s97 = sld [smem:[#allocation4 + %s39]]
      %s98 = ssub.s32 %s96, %s97
      %s99 = ssub.s32 %s28, %s35
      %s100 = sor.u32 %s98, %s99
      %p101 = scmp.eq.s32.totalorder %s100, 0
      %s103 = sadd.s32 %s102, 1
      %s104 = scalar_select %p101, %s102, %s103
      %p107 = pneg %p101
      %p108 = scmp.eq.s32.totalorder %s20, 9
      %p109 = por %p107, %p108
      %p110 = scmp.ne.s32.totalorder %s102, %s105
      %p111 = scmp.eq.s32.totalorder %s20, 0
      %p112 = por %p110, %p111
      %p113 = scmp.ne.s32.totalorder %s102, %s105
      %p114 = scmp.eq.s32.totalorder %s25, 9
      %p115 = por %p113, %p114
      %p116 = scmp.ne.s32.totalorder %s105, %s106
      %p117 = scmp.eq.s32.totalorder %s25, 0
      %p118 = por %p116, %p117
      %p119 = scmp.ne.s32.totalorder %s105, %s106
      %p120 = scmp.eq.s32.totalorder %s26, 9
      %p121 = por %p119, %p120
      %p123 = scmp.ne.s32.totalorder %s106, %s122
      %p124 = scmp.eq.s32.totalorder %s26, 0
      %p125 = por %p123, %p124
      %s126 = sld [smem:[#allocation4 + %s27]]
      %s127 = sld [smem:[#allocation4 + %s39]]
      %s128 = ssub.s32 %s126, %s127
      %s129 = ssub.s32 %s28, %s35
      %s130 = sor.u32 %s128, %s129
      %p131 = scmp.eq.s32.totalorder %s130, 0
      %s133 = sadd.s32 %s132, 1
      %s134 = scalar_select %p131, %s132, %s133
      %p137 = pneg %p131
      %p138 = scmp.eq.s32.totalorder %s20, 9
      %p139 = por %p137, %p138
      %p140 = scmp.ne.s32.totalorder %s132, %s135
      %p141 = scmp.eq.s32.totalorder %s20, 0
      %p142 = por %p140, %p141
      %p143 = scmp.ne.s32.totalorder %s132, %s135
      %p144 = scmp.eq.s32.totalorder %s25, 9
      %p145 = por %p143, %p144
      %p146 = scmp.ne.s32.totalorder %s135, %s136
      %p147 = scmp.eq.s32.totalorder %s25, 0
      %p148 = por %p146, %p147
      %p149 = scmp.ne.s32.totalorder %s135, %s136
      %p150 = scmp.eq.s32.totalorder %s26, 9
      %p151 = por %p149, %p150
      %p153 = scmp.ne.s32.totalorder %s136, %s152
      %p154 = scmp.eq.s32.totalorder %s26, 0
      %p155 = por %p153, %p154
      %s156 = sld [smem:[#allocation4 + %s27]]
      %s157 = sld [smem:[#allocation4 + %s39]]
      %s158 = ssub.s32 %s156, %s157
      %s159 = ssub.s32 %s28, %s35
      %s160 = sor.u32 %s158, %s159
      %p161 = scmp.eq.s32.totalorder %s160, 0
      %s163 = sadd.s32 %s162, 1
      %s164 = scalar_select %p161, %s162, %s163
      %p167 = pneg %p161
      %p168 = scmp.eq.s32.totalorder %s20, 9
      %p169 = por %p167, %p168
      %p170 = scmp.ne.s32.totalorder %s162, %s165
      %p171 = scmp.eq.s32.totalorder %s20, 0
      %p172 = por %p170, %p171
      %p173 = scmp.ne.s32.totalorder %s162, %s165
      %p174 = scmp.eq.s32.totalorder %s25, 9
      %p175 = por %p173, %p174
      %p176 = scmp.ne.s32.totalorder %s165, %s166
      %p177 = scmp.eq.s32.totalorder %s25, 0
      %p178 = por %p176, %p177
      %p179 = scmp.ne.s32.totalorder %s165, %s166
      %p180 = scmp.eq.s32.totalorder %s26, 9
      %p181 = por %p179, %p180
      %p183 = scmp.ne.s32.totalorder %s166, %s182
      %p184 = scmp.eq.s32.totalorder %s26, 0
      %p185 = por %p183, %p184
      %s186 = sld [smem:[#allocation4 + %s27]]
      %s187 = sld [smem:[#allocation4 + %s39]]
      %s188 = ssub.s32 %s186, %s187
      %s189 = ssub.s32 %s28, %s35
      %s190 = sor.u32 %s188, %s189
      %p191 = scmp.eq.s32.totalorder %s190, 0
      %s193 = sadd.s32 %s192, 1
      %s194 = scalar_select %p191, %s192, %s193
      %p197 = pneg %p191
      %p198 = scmp.eq.s32.totalorder %s20, 9
      %p199 = por %p197, %p198
      %p200 = scmp.ne.s32.totalorder %s192, %s195
      %p201 = scmp.eq.s32.totalorder %s20, 0
      %p202 = por %p200, %p201
      %p203 = scmp.ne.s32.totalorder %s192, %s195
      %p204 = scmp.eq.s32.totalorder %s25, 9
      %p205 = por %p203, %p204
      %p206 = scmp.ne.s32.totalorder %s195, %s196
      %p207 = scmp.eq.s32.totalorder %s25, 0
      %p208 = por %p206, %p207
      %p209 = scmp.ne.s32.totalorder %s195, %s196
      %p210 = scmp.eq.s32.totalorder %s26, 9
      %p211 = por %p209, %p210
      %p213 = scmp.ne.s32.totalorder %s196, %s212
      %p214 = scmp.eq.s32.totalorder %s26, 0
      %p215 = por %p213, %p214
      %s216 = sld [smem:[#allocation4 + %s27]]
      %s217 = sld [smem:[#allocation4 + %s39]]
      %s218 = ssub.s32 %s216, %s217
      %p219 = scmp.eq.s32.totalorder %s218, 0
      %s221 = sadd.s32 %s220, 1
      %s222 = scalar_select %p219, %s220, %s221
      %p225 = pneg %p219
      %p226 = scmp.eq.s32.totalorder %s20, 9
      %p227 = por %p225, %p226
      %p228 = scmp.ne.s32.totalorder %s220, %s223
      %p229 = scmp.eq.s32.totalorder %s20, 0
      %p230 = por %p228, %p229
      %p231 = scmp.ne.s32.totalorder %s220, %s223
      %p232 = scmp.eq.s32.totalorder %s25, 9
      %p233 = por %p231, %p232
      %p234 = scmp.ne.s32.totalorder %s223, %s224
      %p235 = scmp.eq.s32.totalorder %s25, 0
      %p236 = por %p234, %p235
      %p237 = scmp.ne.s32.totalorder %s223, %s224
      %p238 = scmp.eq.s32.totalorder %s26, 9
      %p239 = por %p237, %p238
      %p241 = scmp.ne.s32.totalorder %s224, %s240
      %p242 = scmp.eq.s32.totalorder %s26, 0
      %p243 = por %p241, %p242
      %s244 = ssub.s32 %s27, %s39
      %p245 = scmp.eq.s32.totalorder %s244, 0
      %s247 = sadd.s32 %s246, 1
      %s248 = scalar_select %p245, %s246, %s247
      %p251 = pneg %p245
      %p252 = scmp.eq.s32.totalorder %s20, 9
      %p253 = por %p251, %p252
      %p254 = scmp.ne.s32.totalorder %s246, %s249
      %p255 = scmp.eq.s32.totalorder %s20, 0
      %p256 = por %p254, %p255
      %p257 = scmp.ne.s32.totalorder %s246, %s249
      %p258 = scmp.eq.s32.totalorder %s25, 9
      %p259 = por %p257, %p258
      %p260 = scmp.ne.s32.totalorder %s249, %s250
      %p261 = scmp.eq.s32.totalorder %s25, 0
      %p262 = por %p260, %p261
      %p263 = scmp.ne.s32.totalorder %s249, %s250
      %p264 = scmp.eq.s32.totalorder %s26, 9
      %p265 = por %p263, %p264
      %p267 = scmp.ne.s32.totalorder %s250, %s266
      %p268 = scmp.eq.s32.totalorder %s26, 0
      %p269 = por %p267, %p268
      %p270 = scmp.le.s32.totalorder 1, %s20
      %p271 = scmp.lt.s32.totalorder %s20, 11
      %p272 = pnand %p270, %p271
      %p273 = pneg %p272
      // Predicated region
      $region9: #{llama_compressed_mlp.1} parent=5 // pred_check
        _
      $region10: #{llama_compressed_mlp.1} parent=5 // pred_check_branch
        %275 = sbr.rel (%p272) target = $region12
      $region11: #{llama_compressed_mlp.1} parent=5 // pred_region
        %s276 = ssub.s32 %s20, 1
      $region12: #{llama_compressed_mlp.1} parent=5 // pred_fallthru
        _
      %p277 = scmp.lt.s32.totalorder %s20, 10
      // Predicated region
      $region13: #{llama_compressed_mlp.1} parent=5 // pred_check
        %p278 = pneg %p277
      $region14: #{llama_compressed_mlp.1} parent=5 // pred_check_branch
        %280 = sbr.rel (%p278) target = $region16
      $region15: #{llama_compressed_mlp.1} parent=5 // pred_region
        // Predicated region
        $region17: #{llama_compressed_mlp.1} parent=15 // pred_check
          %p281 = pneg %p52
        $region18: #{llama_compressed_mlp.1} parent=15 // pred_check_branch
          %283 = sbr.rel (%p281) target = $region20
        $region19: #{llama_compressed_mlp.1} parent=15 // pred_region
          %s284 = smul.u32 2, %s27
          %p285 = scmp.lt.s32.totalorder %s284, 9
          %s286 = scalar_select %p285, %s284, 9
          %s287 = smul.addr %s286, 4
          %s288 = scalar_lea.vmem %s1, %s287
          %s289 = smul.u32 2, %s27
        $region20: #{llama_compressed_mlp.1} parent=15 // pred_fallthru
          _
        // Predicated region
        $region21: #{llama_compressed_mlp.1} parent=15 // pred_check
          %p290 = pneg %p82
        $region22: #{llama_compressed_mlp.1} parent=15 // pred_check_branch
          %292 = sbr.rel (%p290) target = $region24
        $region23: #{llama_compressed_mlp.1} parent=15 // pred_region
          %s293 = sand.u32 %s72, 1
          %s294 = sand.u32 %s72, 1
          %s295 = smul.addr %s294, 32
          %s296 = scalar_lea.vmem [#allocation5], %s295
          %s297 = sld [smem:[#allocation4 + %s27]]
          %s298 = smul.addr %s297, 8
          %s299 = sadd.s32 %s28, %s298
          %s300 = smul.addr %s299, 8
          %s301 = scalar_lea.vmem %s2, %s300
          // Predicated region
          $region25: #{llama_compressed_mlp.1} parent=23 // pred_check
            _
          $region26: #{llama_compressed_mlp.1} parent=23 // pred_check_branch
            %303 = sbr.rel (0) target = $region28
          $region27: #{llama_compressed_mlp.1} parent=23 // pred_region
            // Predicated region
            $region29: #{llama_compressed_mlp.1} parent=27 // pred_check
              _
            $region30: #{llama_compressed_mlp.1} parent=27 // pred_check_branch
              %305 = sbr.rel (0) target = $region32
            $region31: #{llama_compressed_mlp.1} parent=27 // pred_region
              // Predicated region
              $region44: #{llama_compressed_mlp.1} parent=31 // pred_check
                _
              $region45: #{llama_compressed_mlp.1} parent=31 // pred_check_branch
                %326 = sbr.rel (0) target = $region47
              $region46: #{llama_compressed_mlp.1} parent=31 // pred_region
                loop: start=0, step=1, limit=1
                $region48: #{llama_compressed_mlp.1} parent=46 // loop_pre_header
                  _
                $region49: #{llama_compressed_mlp.1} parent=46 // loop_header
                  %s328 = sphi 0, %s332
                  %p329 = scmp.ge.s32.totalorder %s328, 1
                  %s333 = sphi %s301, %s301
                  %s334 = sphi %s296, %s296
                $region50: #{llama_compressed_mlp.1} parent=46 // loop_header_branch
                  %331 = sbr.rel (%p329) target = $region54
                $region51: #{llama_compressed_mlp.1} parent=46 // loop_body
                  %v335 = vld [vmem:[%s333] sm:$0xff]
                  %336 = vst [vmem:[%s334] sm:$0xff] %v335
                  %v337 = vld [vmem:[%s333 + $0x10] sm:$0xff]
                  %338 = vst [vmem:[%s334 + $0x8] sm:$0xff] %v337
                  %v339 = vld [vmem:[%s333 + $0x20] sm:$0xff]
                  %340 = vst [vmem:[%s334 + $0x10] sm:$0xff] %v339
                  %v341 = vld [vmem:[%s333 + $0x30] sm:$0xff]
                  %342 = vst [vmem:[%s334 + $0x18] sm:$0xff] %v341
                $region52: #{llama_compressed_mlp.1} parent=46 // loop_footer
                  %s332 = sadd.s32 1, %s328
                $region53: #{llama_compressed_mlp.1} parent=46 // loop_footer_branch
                  %327 = sbr.rel target = $region49
                $region54: #{llama_compressed_mlp.1} parent=46 // loop_exit
                  _
              $region47: #{llama_compressed_mlp.1} parent=31 // pred_fallthru
                _
              // Predicated region
              $region55: #{llama_compressed_mlp.1} parent=31 // pred_check
                _
              $region56: #{llama_compressed_mlp.1} parent=31 // pred_check_branch
                %344 = sbr.rel target = $region58
              $region57: #{llama_compressed_mlp.1} parent=31 // pred_region
                _
              $region58: #{llama_compressed_mlp.1} parent=31 // pred_fallthru
                _
            $region32: #{llama_compressed_mlp.1} parent=27 // pred_fallthru
              _
            // Predicated region
            $region33: #{llama_compressed_mlp.1} parent=27 // pred_check
              _
            $region34: #{llama_compressed_mlp.1} parent=27 // pred_check_branch
              %307 = sbr.rel target = $region36
            $region35: #{llama_compressed_mlp.1} parent=27 // pred_region
              loop: start=0, step=1, limit=1
              $region37: #{llama_compressed_mlp.1} parent=35 // loop_pre_header
                _
              $region38: #{llama_compressed_mlp.1} parent=35 // loop_header
                %s310 = sphi 0, %s314
                %p311 = scmp.ge.s32.totalorder %s310, 1
                %s315 = sphi %s301, %s301
                %s316 = sphi %s296, %s296
              $region39: #{llama_compressed_mlp.1} parent=35 // loop_header_branch
                %313 = sbr.rel (%p311) target = $region43
              $region40: #{llama_compressed_mlp.1} parent=35 // loop_body
                %v317 = vld [vmem:[%s315] sm:$0xff]
                %318 = vst [vmem:[%s316] sm:$0xff] %v317
                %v319 = vld [vmem:[%s315 + $0x10] sm:$0xff]
                %320 = vst [vmem:[%s316 + $0x8] sm:$0xff] %v319
                %v321 = vld [vmem:[%s315 + $0x20] sm:$0xff]
                %322 = vst [vmem:[%s316 + $0x10] sm:$0xff] %v321
                %v323 = vld [vmem:[%s315 + $0x30] sm:$0xff]
                %324 = vst [vmem:[%s316 + $0x18] sm:$0xff] %v323
              $region41: #{llama_compressed_mlp.1} parent=35 // loop_footer
                %s314 = sadd.s32 1, %s310
              $region42: #{llama_compressed_mlp.1} parent=35 // loop_footer_branch
                %309 = sbr.rel target = $region38
              $region43: #{llama_compressed_mlp.1} parent=35 // loop_exit
                _
            $region36: #{llama_compressed_mlp.1} parent=27 // pred_fallthru
              _
          $region28: #{llama_compressed_mlp.1} parent=23 // pred_fallthru
            _
          %345 = vnop
        $region24: #{llama_compressed_mlp.1} parent=15 // pred_fallthru
          _
        // Predicated region
        $region59: #{llama_compressed_mlp.1} parent=15 // pred_check
          %p346 = pneg %p112
        $region60: #{llama_compressed_mlp.1} parent=15 // pred_check_branch
          %348 = sbr.rel (%p346) target = $region62
        $region61: #{llama_compressed_mlp.1} parent=15 // pred_region
          %s349 = sand.u32 %s102, 1
          %s350 = sand.u32 %s102, 1
          %s351 = smul.addr %s350, 32
          %s352 = scalar_lea.vmem [#allocation6], %s351
          %s353 = sld [smem:[#allocation4 + %s27]]
          %s354 = smul.addr %s353, 8
          %s355 = sadd.s32 %s28, %s354
          %s356 = smul.addr %s355, 8
          %s357 = scalar_lea.vmem %s3, %s356
          // Predicated region
          $region63: #{llama_compressed_mlp.1} parent=61 // pred_check
            _
          $region64: #{llama_compressed_mlp.1} parent=61 // pred_check_branch
            %359 = sbr.rel (0) target = $region66
          $region65: #{llama_compressed_mlp.1} parent=61 // pred_region
            // Predicated region
            $region67: #{llama_compressed_mlp.1} parent=65 // pred_check
              _
            $region68: #{llama_compressed_mlp.1} parent=65 // pred_check_branch
              %361 = sbr.rel (0) target = $region70
            $region69: #{llama_compressed_mlp.1} parent=65 // pred_region
              // Predicated region
              $region82: #{llama_compressed_mlp.1} parent=69 // pred_check
                _
              $region83: #{llama_compressed_mlp.1} parent=69 // pred_check_branch
                %382 = sbr.rel (0) target = $region85
              $region84: #{llama_compressed_mlp.1} parent=69 // pred_region
                loop: start=0, step=1, limit=1
                $region86: #{llama_compressed_mlp.1} parent=84 // loop_pre_header
                  _
                $region87: #{llama_compressed_mlp.1} parent=84 // loop_header
                  %s384 = sphi 0, %s388
                  %p385 = scmp.ge.s32.totalorder %s384, 1
                  %s389 = sphi %s357, %s357
                  %s390 = sphi %s352, %s352
                $region88: #{llama_compressed_mlp.1} parent=84 // loop_header_branch
                  %387 = sbr.rel (%p385) target = $region92
                $region89: #{llama_compressed_mlp.1} parent=84 // loop_body
                  %v391 = vld [vmem:[%s389] sm:$0xff]
                  %392 = vst [vmem:[%s390] sm:$0xff] %v391
                  %v393 = vld [vmem:[%s389 + $0x10] sm:$0xff]
                  %394 = vst [vmem:[%s390 + $0x8] sm:$0xff] %v393
                  %v395 = vld [vmem:[%s389 + $0x20] sm:$0xff]
                  %396 = vst [vmem:[%s390 + $0x10] sm:$0xff] %v395
                  %v397 = vld [vmem:[%s389 + $0x30] sm:$0xff]
                  %398 = vst [vmem:[%s390 + $0x18] sm:$0xff] %v397
                $region90: #{llama_compressed_mlp.1} parent=84 // loop_footer
                  %s388 = sadd.s32 1, %s384
                $region91: #{llama_compressed_mlp.1} parent=84 // loop_footer_branch
                  %383 = sbr.rel target = $region87
                $region92: #{llama_compressed_mlp.1} parent=84 // loop_exit
                  _
              $region85: #{llama_compressed_mlp.1} parent=69 // pred_fallthru
                _
              // Predicated region
              $region93: #{llama_compressed_mlp.1} parent=69 // pred_check
                _
              $region94: #{llama_compressed_mlp.1} parent=69 // pred_check_branch
                %400 = sbr.rel target = $region96
              $region95: #{llama_compressed_mlp.1} parent=69 // pred_region
                _
              $region96: #{llama_compressed_mlp.1} parent=69 // pred_fallthru
                _
            $region70: #{llama_compressed_mlp.1} parent=65 // pred_fallthru
              _
            // Predicated region
            $region71: #{llama_compressed_mlp.1} parent=65 // pred_check
              _
            $region72: #{llama_compressed_mlp.1} parent=65 // pred_check_branch
              %363 = sbr.rel target = $region74
            $region73: #{llama_compressed_mlp.1} parent=65 // pred_region
              loop: start=0, step=1, limit=1
              $region75: #{llama_compressed_mlp.1} parent=73 // loop_pre_header
                _
              $region76: #{llama_compressed_mlp.1} parent=73 // loop_header
                %s366 = sphi 0, %s370
                %p367 = scmp.ge.s32.totalorder %s366, 1
                %s371 = sphi %s357, %s357
                %s372 = sphi %s352, %s352
              $region77: #{llama_compressed_mlp.1} parent=73 // loop_header_branch
                %369 = sbr.rel (%p367) target = $region81
              $region78: #{llama_compressed_mlp.1} parent=73 // loop_body
                %v373 = vld [vmem:[%s371] sm:$0xff]
                %374 = vst [vmem:[%s372] sm:$0xff] %v373
                %v375 = vld [vmem:[%s371 + $0x10] sm:$0xff]
                %376 = vst [vmem:[%s372 + $0x8] sm:$0xff] %v375
                %v377 = vld [vmem:[%s371 + $0x20] sm:$0xff]
                %378 = vst [vmem:[%s372 + $0x10] sm:$0xff] %v377
                %v379 = vld [vmem:[%s371 + $0x30] sm:$0xff]
                %380 = vst [vmem:[%s372 + $0x18] sm:$0xff] %v379
              $region79: #{llama_compressed_mlp.1} parent=73 // loop_footer
                %s370 = sadd.s32 1, %s366
              $region80: #{llama_compressed_mlp.1} parent=73 // loop_footer_branch
                %365 = sbr.rel target = $region76
              $region81: #{llama_compressed_mlp.1} parent=73 // loop_exit
                _
            $region74: #{llama_compressed_mlp.1} parent=65 // pred_fallthru
              _
          $region66: #{llama_compressed_mlp.1} parent=61 // pred_fallthru
            _
          %401 = vnop
        $region62: #{llama_compressed_mlp.1} parent=15 // pred_fallthru
          _
        // Predicated region
        $region97: #{llama_compressed_mlp.1} parent=15 // pred_check
          %p402 = pneg %p142
        $region98: #{llama_compressed_mlp.1} parent=15 // pred_check_branch
          %404 = sbr.rel (%p402) target = $region100
        $region99: #{llama_compressed_mlp.1} parent=15 // pred_region
          %s405 = sld [smem:[#allocation4 + %s27]]
          %s406 = smul.u32 4, %s28
          %p407 = scmp.lt.s32.totalorder %s405, 3
          %s408 = scalar_select %p407, %s405, 3
          %p409 = scmp.lt.s32.totalorder %s406, 7
          %s410 = scalar_select %p409, %s406, 7
          %s411 = smul.addr %s408, 8
          %s412 = sadd.s32 %s410, %s411
          %s413 = smul.addr %s412, 8
          %s414 = scalar_lea.vmem %s4, %s413
          %s415 = sld [smem:[#allocation4 + %s27]]
          %s416 = smul.u32 4, %s28
        $region100: #{llama_compressed_mlp.1} parent=15 // pred_fallthru
          _
        // Predicated region
        $region101: #{llama_compressed_mlp.1} parent=15 // pred_check
          %p417 = pneg %p172
        $region102: #{llama_compressed_mlp.1} parent=15 // pred_check_branch
          %419 = sbr.rel (%p417) target = $region104
        $region103: #{llama_compressed_mlp.1} parent=15 // pred_region
          %s420 = sld [smem:[#allocation4 + %s27]]
          %p421 = scmp.lt.s32.totalorder %s420, 3
          %s422 = scalar_select %p421, %s420, 3
          %p423 = scmp.lt.s32.totalorder %s28, 1
          %s424 = scalar_select %p423, %s28, 1
          %s425 = smul.addr %s422, 2
          %s426 = sadd.s32 %s424, %s425
          %s427 = scalar_lea.vmem %s5, %s426
          %s428 = sld [smem:[#allocation4 + %s27]]
        $region104: #{llama_compressed_mlp.1} parent=15 // pred_fallthru
          _
        // Predicated region
        $region105: #{llama_compressed_mlp.1} parent=15 // pred_check
          %p429 = pneg %p202
        $region106: #{llama_compressed_mlp.1} parent=15 // pred_check_branch
          %431 = sbr.rel (%p429) target = $region108
        $region107: #{llama_compressed_mlp.1} parent=15 // pred_region
          %s432 = sld [smem:[#allocation4 + %s27]]
          %p433 = scmp.lt.s32.totalorder %s432, 3
          %s434 = scalar_select %p433, %s432, 3
          %p435 = scmp.lt.s32.totalorder %s28, 1
          %s436 = scalar_select %p435, %s28, 1
          %s437 = smul.addr %s434, 2
          %s438 = sadd.s32 %s436, %s437
          %s439 = scalar_lea.vmem %s6, %s438
          %s440 = sld [smem:[#allocation4 + %s27]]
        $region108: #{llama_compressed_mlp.1} parent=15 // pred_fallthru
          _
        // Predicated region
        $region109: #{llama_compressed_mlp.1} parent=15 // pred_check
          %p441 = pneg %p230
        $region110: #{llama_compressed_mlp.1} parent=15 // pred_check_branch
          %443 = sbr.rel (%p441) target = $region112
        $region111: #{llama_compressed_mlp.1} parent=15 // pred_region
          %s444 = sld [smem:[#allocation4 + %s27]]
          %p445 = scmp.lt.s32.totalorder %s444, 3
          %s446 = scalar_select %p445, %s444, 3
          %s447 = scalar_lea.vmem %s7, %s446
          %s448 = sld [smem:[#allocation4 + %s27]]
        $region112: #{llama_compressed_mlp.1} parent=15 // pred_fallthru
          _
      $region16: #{llama_compressed_mlp.1} parent=5 // pred_fallthru
        _
      %p449 = scmp.le.s32.totalorder 1, %s20
      %p450 = scmp.lt.s32.totalorder %s20, 11
      %p451 = pnand %p449, %p450
      %p452 = pneg %p451
      // Predicated region
      $region113: #{llama_compressed_mlp.1} parent=5 // pred_check
        _
      $region114: #{llama_compressed_mlp.1} parent=5 // pred_check_branch
        %454 = sbr.rel (%p451) target = $region116
      $region115: #{llama_compressed_mlp.1} parent=5 // pred_region
        %s455 = ssub.s32 %s20, 1
        %s456 = sand.u32 %s75, 1
        %s457 = sand.u32 %s75, 1
        %s458 = smul.addr %s457, 32
        %s459 = scalar_lea.vmem [#allocation5], %s458
        // Predicated region
        $region117: #{llama_compressed_mlp.1} parent=115 // pred_check
          %p460 = pneg %p88
        $region118: #{llama_compressed_mlp.1} parent=115 // pred_check_branch
          %462 = sbr.rel (%p460) target = $region120
        $region119: #{llama_compressed_mlp.1} parent=115 // pred_region
          _
        $region120: #{llama_compressed_mlp.1} parent=115 // pred_fallthru
          _
        %s463 = sand.u32 %s105, 1
        %s464 = sand.u32 %s105, 1
        %s465 = smul.addr %s464, 32
        %s466 = scalar_lea.vmem [#allocation6], %s465
        // Predicated region
        $region121: #{llama_compressed_mlp.1} parent=115 // pred_check
          %p467 = pneg %p118
        $region122: #{llama_compressed_mlp.1} parent=115 // pred_check_branch
          %469 = sbr.rel (%p467) target = $region124
        $region123: #{llama_compressed_mlp.1} parent=115 // pred_region
          _
        $region124: #{llama_compressed_mlp.1} parent=115 // pred_fallthru
          _
        %s470 = smul.u32 2, %s29
        %p471 = scmp.lt.s32.totalorder %s470, 9
        %s472 = scalar_select %p471, %s470, 9
        %s473 = smul.addr %s472, 4
        %s474 = scalar_lea.vmem %s1, %s473
        %p475 = pneg %p58
        %p476 = pneg %p55
        %s477 = sand.u32 %s75, 1
        %s478 = sand.u32 %s75, 1
        %s479 = smul.addr %s478, 32
        %s480 = scalar_lea.vmem [#allocation5], %s479
        %p481 = pneg %p88
        %p482 = pneg %p85
        %s483 = sand.u32 %s105, 1
        %s484 = sand.u32 %s105, 1
        %s485 = smul.addr %s484, 32
        %s486 = scalar_lea.vmem [#allocation6], %s485
        %p487 = pneg %p118
        %p488 = pneg %p115
        %s489 = sld [smem:[#allocation4 + %s29]]
        %s490 = smul.u32 4, %s30
        %p491 = scmp.lt.s32.totalorder %s489, 3
        %s492 = scalar_select %p491, %s489, 3
        %p493 = scmp.lt.s32.totalorder %s490, 7
        %s494 = scalar_select %p493, %s490, 7
        %s495 = smul.addr %s492, 8
        %s496 = sadd.s32 %s494, %s495
        %s497 = smul.addr %s496, 8
        %s498 = scalar_lea.vmem %s4, %s497
        %p499 = pneg %p148
        %p500 = pneg %p145
        %s501 = sld [smem:[#allocation4 + %s29]]
        %p502 = scmp.lt.s32.totalorder %s501, 3
        %s503 = scalar_select %p502, %s501, 3
        %p504 = scmp.lt.s32.totalorder %s30, 1
        %s505 = scalar_select %p504, %s30, 1
        %s506 = smul.addr %s503, 2
        %s507 = sadd.s32 %s505, %s506
        %s508 = scalar_lea.vmem %s5, %s507
        %p509 = pneg %p178
        %p510 = pneg %p175
        %s511 = sld [smem:[#allocation4 + %s29]]
        %p512 = scmp.lt.s32.totalorder %s511, 3
        %s513 = scalar_select %p512, %s511, 3
        %p514 = scmp.lt.s32.totalorder %s30, 1
        %s515 = scalar_select %p514, %s30, 1
        %s516 = smul.addr %s513, 2
        %s517 = sadd.s32 %s515, %s516
        %s518 = scalar_lea.vmem %s6, %s517
        %p519 = pneg %p208
        %p520 = pneg %p205
        %s521 = sld [smem:[#allocation4 + %s29]]
        %p522 = scmp.lt.s32.totalorder %s521, 3
        %s523 = scalar_select %p522, %s521, 3
        %s524 = scalar_lea.vmem %s7, %s523
        %p525 = pneg %p236
        %p526 = pneg %p233
        %p527 = pneg %p262
        %p528 = pneg %p259
        %s529 = smul.u32 2, %s29
        %p530 = scmp.lt.s32.totalorder %s529, 9
        %s531 = scalar_select %p530, %s529, 9
        %s532 = smul.addr %s531, 8
        %s533 = scalar_lea.vmem %s8, %s532
        %s534 = smul.u32 2, %s29
        %p535 = scmp.lt.s32.totalorder %s534, 9
        %s536 = scalar_select %p535, %s534, 9
        %s537 = smul.addr %s536, 4
        %s538 = scalar_lea.vmem %s1, %s537
        %s539 = smul.u32 2, %s29
        %s540 = sld [smem:[#allocation4 + %s29]]
        %s541 = sld [smem:[#allocation4 + %s29]]
        %s542 = sld [smem:[#allocation4 + %s29]]
        %s543 = smul.u32 4, %s30
        %p544 = scmp.lt.s32.totalorder %s542, 3
        %s545 = scalar_select %p544, %s542, 3
        %p546 = scmp.lt.s32.totalorder %s543, 7
        %s547 = scalar_select %p546, %s543, 7
        %s548 = smul.addr %s545, 8
        %s549 = sadd.s32 %s547, %s548
        %s550 = smul.addr %s549, 8
        %s551 = scalar_lea.vmem %s4, %s550
        %s552 = sld [smem:[#allocation4 + %s29]]
        %s553 = smul.u32 4, %s30
        %s554 = sld [smem:[#allocation4 + %s29]]
        %p555 = scmp.lt.s32.totalorder %s554, 3
        %s556 = scalar_select %p555, %s554, 3
        %p557 = scmp.lt.s32.totalorder %s30, 1
        %s558 = scalar_select %p557, %s30, 1
        %s559 = smul.addr %s556, 2
        %s560 = sadd.s32 %s558, %s559
        %s561 = scalar_lea.vmem %s5, %s560
        %s562 = sld [smem:[#allocation4 + %s29]]
        %s563 = sld [smem:[#allocation4 + %s29]]
        %p564 = scmp.lt.s32.totalorder %s563, 3
        %s565 = scalar_select %p564, %s563, 3
        %p566 = scmp.lt.s32.totalorder %s30, 1
        %s567 = scalar_select %p566, %s30, 1
        %s568 = smul.addr %s565, 2
        %s569 = sadd.s32 %s567, %s568
        %s570 = scalar_lea.vmem %s6, %s569
        %s571 = sld [smem:[#allocation4 + %s29]]
        %s572 = sld [smem:[#allocation4 + %s29]]
        %p573 = scmp.lt.s32.totalorder %s572, 3
        %s574 = scalar_select %p573, %s572, 3
        %s575 = scalar_lea.vmem %s7, %s574
        %s576 = sld [smem:[#allocation4 + %s29]]
        %s577 = smul.u32 2, %s29
        %p578 = scmp.lt.s32.totalorder %s577, 9
        %s579 = scalar_select %p578, %s577, 9
        %s580 = smul.addr %s579, 8
        %s581 = scalar_lea.vmem %s8, %s580
        %s582 = smul.u32 2, %s29
        %p584 = scmp.eq.s32.totalorder %s30, 0
        // Predicated region
        $region125: #{llama_compressed_mlp.1} parent=115 // pred_check
          %p585 = pneg %p584
        $region126: #{llama_compressed_mlp.1} parent=115 // pred_check_branch
          %587 = sbr.rel (%p585) target = $region128
        $region127: #{llama_compressed_mlp.1} parent=115 // pred_region
          %588 = vst [vmem:[#allocation2] sm:$0xff] 0.0
          %589 = vst [vmem:[#allocation2 + $0x8] sm:$0xff] 0.0
        $region128: #{llama_compressed_mlp.1} parent=115 // pred_fallthru
          _
        %v590 = vld [vmem:[%s538] sm:$0xf]
        %v591 = vld [vmem:[%s538 + $0x4] sm:$0xf]
        %v592 = vld [vmem:[%s459] sm:$0xff]
        %v593 = vld [vmem:[%s459 + $0x8] sm:$0xff]
        %v594 = vld [vmem:[%s459 + $0x10] sm:$0xff]
        %v595 = vld [vmem:[%s459 + $0x18] sm:$0xff]
        %v596 = vunpack.c.l.s8.bf16 %v592
        %v597 = vunpack.c.h.s8.bf16 %v592
        %v598 = vunpack.c.l.s8.bf16 %v593
        %v599 = vunpack.c.h.s8.bf16 %v593
        %v600 = vunpack.c.l.s8.bf16 %v594
        %v601 = vunpack.c.h.s8.bf16 %v594
        %v602 = vunpack.c.l.s8.bf16 %v595
        %v603 = vunpack.c.h.s8.bf16 %v595
        %v604 = vld [vmem:[%s466] sm:$0xff]
        %v605 = vld [vmem:[%s466 + $0x8] sm:$0xff]
        %v606 = vld [vmem:[%s466 + $0x10] sm:$0xff]
        %v607 = vld [vmem:[%s466 + $0x18] sm:$0xff]
        %v608 = vunpack.c.l.s8.bf16 %v604
        %v609 = vunpack.c.h.s8.bf16 %v604
        %v610 = vunpack.c.l.s8.bf16 %v605
        %v611 = vunpack.c.h.s8.bf16 %v605
        %v612 = vunpack.c.l.s8.bf16 %v606
        %v613 = vunpack.c.h.s8.bf16 %v606
        %v614 = vunpack.c.l.s8.bf16 %v607
        %v615 = vunpack.c.h.s8.bf16 %v607
        %v618 = vunpack.c.l.b16 %v590
        %v619 = vunpack.c.l.b16 %v591
        %v620 = vpack.c.b16 %v619, %v618
        %622 = vmatprep.subr.bf16.mxu0 0
        %623 = vmatpush1.bf16.msra.mxu0 %v596
        %624 = vmatprep.subr.bf16.mxu0 0
        %625 = vmatpush1.bf16.msra.mxu0 %v597
        %626 = vmatprep.subr.bf16.mxu0 0
        %627 = vmatpush1.bf16.msra.mxu0 %v598
        %628 = vmatprep.subr.bf16.mxu0 0
        %629 = vmatpush1.bf16.msra.mxu0 %v599
        %630 = vmatprep.subr.bf16.mxu0 0
        %631 = vmatpush1.bf16.msra.mxu0 %v600
        %632 = vmatprep.subr.bf16.mxu0 0
        %633 = vmatpush1.bf16.msra.mxu0 %v601
        %634 = vmatprep.subr.bf16.mxu0 0
        %635 = vmatpush1.bf16.msra.mxu0 %v602
        %636 = vmatprep.subr.bf16.mxu0 0
        %637 = vmatpush1.bf16.msra.mxu0 %v603
        %638 = vmatprep.subr.bf16.mxu0 0
        %639 = vmatpush1.bf16.msra.mxu0 0
        %640 = vmatprep.subr.bf16.mxu0 0
        %641 = vmatpush1.bf16.msra.mxu0 0
        %642 = vmatprep.subr.bf16.mxu0 0
        %643 = vmatpush1.bf16.msra.mxu0 0
        %644 = vmatprep.subr.bf16.mxu0 0
        %645 = vmatpush1.bf16.msra.mxu0 0
        %646 = vmatprep.subr.bf16.mxu0 0
        %647 = vmatpush1.bf16.msra.mxu0 0
        %648 = vmatprep.subr.bf16.mxu0 0
        %649 = vmatpush1.bf16.msra.mxu0 0
        %650 = vmatprep.subr.bf16.mxu0 0
        %651 = vmatpush1.bf16.msra.mxu0 0
        %652 = vmatprep.subr.bf16.mxu0 0
        %653 = vmatpush1.bf16.msra.mxu0 0
        %654 = vmatprep.mubr.bf16.mxu0 0
        %655 = vmatmul.mubr.bf16.gmra.mrb[0].mxu0 %v620
        %v656 = vpop.f32.mrb[0].mxu0
        %v657 = vadd.f32 0.0, %v656
        %v658 = vpop.f32.mrb[0].mxu0
        %v659 = vpop.f32.mrb[0].mxu0
        %v660 = vadd.f32 0.0, %v659
        %v661 = vpop.f32.mrb[0].mxu0
        %662 = vdwg.mxu0
        %v663 = vld [vmem:[%s561] sm:$0x1]
        %v665 = vlaneseq
        %v666 = vshrl.u32 %v665, 7
        %v667 = vsub.s32 0, %v666
        %v668 = vrot.slane %v663, %v667
        %v670 = vmul.f32 %v657, %v668
        %v671 = vmul.f32 %v660, %v668
        %672 = vmatprep.subr.bf16.mxu0 0
        %673 = vmatpush1.bf16.msra.mxu0 %v608
        %674 = vmatprep.subr.bf16.mxu0 0
        %675 = vmatpush1.bf16.msra.mxu0 %v609
        %676 = vmatprep.subr.bf16.mxu0 0
        %677 = vmatpush1.bf16.msra.mxu0 %v610
        %678 = vmatprep.subr.bf16.mxu0 0
        %679 = vmatpush1.bf16.msra.mxu0 %v611
        %680 = vmatprep.subr.bf16.mxu0 0
        %681 = vmatpush1.bf16.msra.mxu0 %v612
        %682 = vmatprep.subr.bf16.mxu0 0
        %683 = vmatpush1.bf16.msra.mxu0 %v613
        %684 = vmatprep.subr.bf16.mxu0 0
        %685 = vmatpush1.bf16.msra.mxu0 %v614
        %686 = vmatprep.subr.bf16.mxu0 0
        %687 = vmatpush1.bf16.msra.mxu0 %v615
        %688 = vmatprep.subr.bf16.mxu0 0
        %689 = vmatpush1.bf16.msra.mxu0 0
        %690 = vmatprep.subr.bf16.mxu0 0
        %691 = vmatpush1.bf16.msra.mxu0 0
        %692 = vmatprep.subr.bf16.mxu0 0
        %693 = vmatpush1.bf16.msra.mxu0 0
        %694 = vmatprep.subr.bf16.mxu0 0
        %695 = vmatpush1.bf16.msra.mxu0 0
        %696 = vmatprep.subr.bf16.mxu0 0
        %697 = vmatpush1.bf16.msra.mxu0 0
        %698 = vmatprep.subr.bf16.mxu0 0
        %699 = vmatpush1.bf16.msra.mxu0 0
        %700 = vmatprep.subr.bf16.mxu0 0
        %701 = vmatpush1.bf16.msra.mxu0 0
        %702 = vmatprep.subr.bf16.mxu0 0
        %703 = vmatpush1.bf16.msra.mxu0 0
        %704 = vmatprep.mubr.bf16.mxu0 0
        %705 = vmatmul.mubr.bf16.gmra.mrb[0].mxu0 %v620
        %v706 = vpop.f32.mrb[0].mxu0
        %v707 = vadd.f32 0.0, %v706
        %v708 = vpop.f32.mrb[0].mxu0
        %v709 = vpop.f32.mrb[0].mxu0
        %v710 = vadd.f32 0.0, %v709
        %v711 = vpop.f32.mrb[0].mxu0
        %712 = vdwg.mxu0
        %v713 = vld [vmem:[%s570] sm:$0x1]
        %v715 = vlaneseq
        %v716 = vshrl.u32 %v715, 7
        %v717 = vsub.s32 0, %v716
        %v718 = vrot.slane %v713, %v717
        %v720 = vmul.f32 %v707, %v718
        %v721 = vmul.f32 %v710, %v718
        %v722 = vxor.u32 %v670, 2147483648
        %v723 = vxor.u32 %v671, 2147483648
        %v724 = vmul.f32 %v722, 1.442695
        %v725 = vpow.pop %v724
        %v726 = vmul.f32 %v723, 1.442695
        %v727 = vpow.pop %v726
        %v728 = vadd.f32 %v725, 1.0
        %v729 = vadd.f32 %v727, 1.0
        %v730 = vrcp.pop %v728
        %v731 = vmul.f32 1.0, %v730
        %v732 = vrcp.pop %v729
        %v733 = vmul.f32 1.0, %v732
        %v734 = vmul.f32 %v670, %v731
        %v735 = vmul.f32 %v671, %v733
        %v736 = vmul.f32 %v734, %v720
        %v737 = vmul.f32 %v735, %v721
        %v738 = vpack.c.bf16 %v737, %v736
        %v739 = vld [vmem:[%s551] sm:$0xff]
        %v740 = vld [vmem:[%s551 + $0x8] sm:$0xff]
        %v741 = vld [vmem:[%s551 + $0x10] sm:$0xff]
        %v742 = vld [vmem:[%s551 + $0x18] sm:$0xff]
        %v743 = vunpack.c.l.s8.bf16 %v739
        %v744 = vunpack.c.h.s8.bf16 %v739
        %v745 = vunpack.c.l.s8.bf16 %v740
        %v746 = vunpack.c.h.s8.bf16 %v740
        %v747 = vunpack.c.l.s8.bf16 %v741
        %v748 = vunpack.c.h.s8.bf16 %v741
        %v749 = vunpack.c.l.s8.bf16 %v742
        %v750 = vunpack.c.h.s8.bf16 %v742
        %v751 = vld [vmem:[#allocation2] sm:$0xff]
        %v752 = vld [vmem:[#allocation2 + $0x8] sm:$0xff]
        %753 = vmatprep.subr.bf16.mxu0 0
        %754 = vmatpush1.bf16.msra.mxu0 %v743
        %755 = vmatprep.subr.bf16.mxu0 0
        %756 = vmatpush1.bf16.msra.mxu0 %v744
        %757 = vmatprep.subr.bf16.mxu0 0
        %758 = vmatpush1.bf16.msra.mxu0 %v745
        %759 = vmatprep.subr.bf16.mxu0 0
        %760 = vmatpush1.bf16.msra.mxu0 %v746
        %761 = vmatprep.subr.bf16.mxu0 0
        %762 = vmatpush1.bf16.msra.mxu0 %v747
        %763 = vmatprep.subr.bf16.mxu0 0
        %764 = vmatpush1.bf16.msra.mxu0 %v748
        %765 = vmatprep.subr.bf16.mxu0 0
        %766 = vmatpush1.bf16.msra.mxu0 %v749
        %767 = vmatprep.subr.bf16.mxu0 0
        %768 = vmatpush1.bf16.msra.mxu0 %v750
        %769 = vmatprep.subr.bf16.mxu0 0
        %770 = vmatpush1.bf16.msra.mxu0 0
        %771 = vmatprep.subr.bf16.mxu0 0
        %772 = vmatpush1.bf16.msra.mxu0 0
        %773 = vmatprep.subr.bf16.mxu0 0
        %774 = vmatpush1.bf16.msra.mxu0 0
        %775 = vmatprep.subr.bf16.mxu0 0
        %776 = vmatpush1.bf16.msra.mxu0 0
        %777 = vmatprep.subr.bf16.mxu0 0
        %778 = vmatpush1.bf16.msra.mxu0 0
        %779 = vmatprep.subr.bf16.mxu0 0
        %780 = vmatpush1.bf16.msra.mxu0 0
        %781 = vmatprep.subr.bf16.mxu0 0
        %782 = vmatpush1.bf16.msra.mxu0 0
        %783 = vmatprep.subr.bf16.mxu0 0
        %784 = vmatpush1.bf16.msra.mxu0 0
        %785 = vmatprep.mubr.bf16.mxu0 0
        %786 = vmatmul.mubr.bf16.gmra.mrb[0].mxu0 %v738
        %v787 = vpop.f32.mrb[0].mxu0
        %v788 = vadd.f32 0.0, %v787
        %v789 = vpop.f32.mrb[0].mxu0
        %v790 = vpop.f32.mrb[0].mxu0
        %v791 = vadd.f32 0.0, %v790
        %v792 = vpop.f32.mrb[0].mxu0
        %793 = vdwg.mxu0
        %v794 = vadd.f32 %v751, %v788
        %v795 = vadd.f32 %v752, %v791
        %796 = vst [vmem:[#allocation2] sm:$0xff] %v794
        %797 = vst [vmem:[#allocation2 + $0x8] sm:$0xff] %v795
        %p798 = scmp.eq.s32.totalorder %s30, 1
        // Predicated region
        $region129: #{llama_compressed_mlp.1} parent=115 // pred_check
          %p799 = pneg %p798
        $region130: #{llama_compressed_mlp.1} parent=115 // pred_check_branch
          %801 = sbr.rel (%p799) target = $region132
        $region131: #{llama_compressed_mlp.1} parent=115 // pred_region
          %v802 = vld [vmem:[#allocation2] sm:$0xff]
          %v803 = vld [vmem:[#allocation2 + $0x8] sm:$0xff]
          %v804 = vld [vmem:[%s575] sm:$0x1]
          %v806 = vlaneseq
          %v807 = vshrl.u32 %v806, 7
          %v808 = vsub.s32 0, %v807
          %v809 = vrot.slane %v804, %v808
          %v811 = vmul.f32 %v802, %v809
          %v812 = vmul.f32 %v803, %v809
          %813 = vst [vmem:[%s581] sm:$0xff] %v811
          %814 = vst [vmem:[%s581 + $0x8] sm:$0xff] %v812
        $region132: #{llama_compressed_mlp.1} parent=115 // pred_fallthru
          _
        %s815 = smul.u32 2, %s29
        %p816 = scmp.lt.s32.totalorder %s815, 9
        %s817 = scalar_select %p816, %s815, 9
        %s818 = smul.addr %s817, 8
        %s819 = scalar_lea.vmem %s8, %s818
        // Predicated region
        $region133: #{llama_compressed_mlp.1} parent=115 // pred_check
          %p820 = pneg %p259
        $region134: #{llama_compressed_mlp.1} parent=115 // pred_check_branch
          %822 = sbr.rel (%p820) target = $region136
        $region135: #{llama_compressed_mlp.1} parent=115 // pred_region
          %s823 = smul.u32 2, %s29
        $region136: #{llama_compressed_mlp.1} parent=115 // pred_fallthru
          _
      $region116: #{llama_compressed_mlp.1} parent=5 // pred_fallthru
        _
      %p824 = scmp.le.s32.totalorder 2, %s20
      // Predicated region
      $region137: #{llama_compressed_mlp.1} parent=5 // pred_check
        %p825 = pneg %p824
      $region138: #{llama_compressed_mlp.1} parent=5 // pred_check_branch
        %827 = sbr.rel (%p825) target = $region140
      $region139: #{llama_compressed_mlp.1} parent=5 // pred_region
        %s828 = ssub.s32 %s20, 2
        // Predicated region
        $region141: #{llama_compressed_mlp.1} parent=139 // pred_check
          %p829 = pneg %p265
        $region142: #{llama_compressed_mlp.1} parent=139 // pred_check_branch
          %831 = sbr.rel (%p829) target = $region144
        $region143: #{llama_compressed_mlp.1} parent=139 // pred_region
          %s832 = smul.u32 2, %s31
          %p833 = scmp.lt.s32.totalorder %s832, 9
          %s834 = scalar_select %p833, %s832, 9
          %s835 = smul.addr %s834, 8
          %s836 = scalar_lea.vmem %s8, %s835
        $region144: #{llama_compressed_mlp.1} parent=139 // pred_fallthru
          _
      $region140: #{llama_compressed_mlp.1} parent=5 // pred_fallthru
        _
    $region6: #{llama_compressed_mlp.1} parent=1 // loop_footer
      %s24 = sadd.s32 1, %s20
    $region7: #{llama_compressed_mlp.1} parent=1 // loop_footer_branch
      %19 = sbr.rel target = $region3
    $region8: #{llama_compressed_mlp.1} parent=1 // loop_exit
      _

</llo_original>
